<compile_context>
chip_gen: v7x
topology: tpu7x:2x2x1
jax: 0.10.0
libtpu: 0.0.40
codegen_flags: <defaults>
</compile_context>

<pallas_src>
import functools
import math

import numpy as np
import jax
import jax.numpy as jnp
from jax import lax
from jax.experimental import pallas as pl
from jax.experimental.pallas import tpu as pltpu


def _round_up(x: int, m: int) -> int:
    return ((x + m - 1) // m) * m


def _gaussian_rbf_kernel(dist_ref, expand_ref, negmu_ref, out_ref, *, coeff):
    """One grid step.

    dist_ref  : (tm, fold)  f32  -- `fold` consecutive distances per row
    expand_ref: (fold, L)   f32  -- constant 0/1 matrix; column j selects sub-row j // n_rbf
    negmu_ref : (1, L)      f32  -- constant -mu[j % n_rbf]
    out_ref   : (tm, L)          -- lane-dense output block
    """
    # Fold expansion on the (otherwise idle) MXU: replicates each distance across its
    # n_rbf output lanes.  0/1 matrix + HIGHEST precision => exact f32 gather.
    d = jnp.dot(dist_ref[...], expand_ref[...],
                preferred_element_type=jnp.float32,
                precision=lax.Precision.HIGHEST)
    diff = d + negmu_ref[...]                                   # 1 VPU add
    out_ref[...] = jnp.exp(coeff * diff * diff).astype(out_ref.dtype)  # 2 VPU mul + EUP exp


_TARGET_OUT_BLOCK_BYTES = 4 << 20   # ~4 MiB out block: ~85% HBM roofline; double-buffered
                                    # footprint stays < ~12 MiB on v5e/v6e/v7x
_SUBLANE_ALIGN = 16                 # multiple of both f32 (8) and bf16 (16) sublane tiles


def gaussian_rbf(dist: jax.Array, *, coeff: float, expand: jax.Array, negmu: jax.Array,
                 n_rbf: int, fold: int, out_dtype=jnp.float32,
                 keep_padding: bool = False) -> jax.Array:
    """dist: arbitrary shape; returns (dist.size, n_rbf) in out_dtype."""
    flat = dist.reshape(-1).astype(jnp.float32)
    n = flat.shape[0]
    L = fold * n_rbf

    # Pad N only up to a multiple of `fold` (at most fold-1 extra rows of input).
    n_pad = _round_up(n, fold)
    if n_pad != n:
        flat = jnp.pad(flat, (0, n_pad - n))
    rows = n_pad // fold
    dist2d = flat.reshape(rows, fold)

    # Row tile: big blocks (mem-bound kernel), capped for VMEM, and split into >=2
    # grid steps when possible so the "parallel" axis shards over v7x's two TCs.
    tm_cap = max(_SUBLANE_ALIGN,
                 (_TARGET_OUT_BLOCK_BYTES // (L * 4)) // _SUBLANE_ALIGN * _SUBLANE_ALIGN)
    if rows > tm_cap:
        tm = tm_cap
    elif rows >= 2 * _SUBLANE_ALIGN:
        tm = _round_up(pl.cdiv(rows, 2), _SUBLANE_ALIGN)
    else:
        tm = rows                      # block dim == full array dim (always legal)
    grid = (pl.cdiv(rows, tm),)

    out = pl.pallas_call(
        functools.partial(_gaussian_rbf_kernel, coeff=float(coeff)),
        out_shape=jax.ShapeDtypeStruct((rows, L), out_dtype),
        grid_spec=pltpu.PrefetchScalarGridSpec(
            num_scalar_prefetch=0,
            grid=grid,
            in_specs=[
                pl.BlockSpec((tm, fold), lambda i: (i, 0)),
                pl.BlockSpec((fold, L), lambda i: (0, 0)),   # constant across grid
                pl.BlockSpec((1, L), lambda i: (0, 0)),      # constant across grid
            ],
            out_specs=pl.BlockSpec((tm, L), lambda i: (i, 0)),
        ),
        compiler_params=pltpu.CompilerParams(
            dimension_semantics=("parallel",),
            vmem_limit_bytes=32 * 1024 * 1024,
        ),
    )(dist2d, expand, negmu)

    out = out.reshape(n_pad, n_rbf)    # free: identical row-major memory layout
    if keep_padding or n_pad == n:
        return out                     # zero-copy path
    # TODO(synk): jit this together with its consumer (or use keep_padding=True) so the
    # slice fuses; standalone it is one extra copy over the output when n % fold != 0.
    return out[:n]


class GaussianRBFIPUJax:
    """JAX/Pallas port of schnetpack.ipu_modules.GaussianRBFIPU (trainable=False)."""

    def __init__(self, n_rbf: int, cutoff: float, start: float = 0.0,
                 out_dtype=jnp.float32):
        self.n_rbf = int(n_rbf)
        offsets_np = np.linspace(start, cutoff, n_rbf).astype(np.float32)
        self.offsets = jnp.asarray(offsets_np)
        self.coeff = float(-0.5 / float(offsets_np[1] - offsets_np[0]) ** 2)
        self.out_dtype = out_dtype

        # Lane folding: fold consecutive distances per output row so the lane width
        # fold*n_rbf is a multiple of 128 whenever possible (unmasked full-lane stores).
        self.fold = min(64, 128 // math.gcd(self.n_rbf, 128))
        L = self.fold * self.n_rbf
        expand = np.zeros((self.fold, L), np.float32)
        for k in range(self.fold):
            expand[k, k * self.n_rbf:(k + 1) * self.n_rbf] = 1.0
        negmu = -np.tile(offsets_np, self.fold)[None, :].astype(np.float32)
        self.expand = jnp.asarray(expand)   # (fold, L) constant MXU expansion matrix
        self.negmu = jnp.asarray(negmu)     # (1, L) constant bias (-mu per lane)
        # TODO(synk): trainable=True (learned offsets) would need negmu rebuilt from a
        # parameter array every call instead of these precomputed constants.

    def __call__(self, dist: jax.Array, keep_padding: bool = False) -> jax.Array:
        return gaussian_rbf(dist, coeff=self.coeff, expand=self.expand,
                            negmu=self.negmu, n_rbf=self.n_rbf, fold=self.fold,
                            out_dtype=self.out_dtype, keep_padding=keep_padding)


def _reference(dist, offsets, coeff):
    d = dist.reshape(-1, 1) - offsets.reshape(1, -1)
    return jnp.exp(coeff * d ** 2)


if __name__ == "__main__":
    root = jax.random.PRNGKey(0)
    k1, k2 = jax.random.split(root)
    cutoff = 5.0

    # Case 1: n_rbf=32 -> fold=4, L=128; n=200 is a multiple of fold -> zero-copy path,
    # 2 grid steps with a partial edge block.
    mod32 = GaussianRBFIPUJax(n_rbf=32, cutoff=cutoff, start=0.0)
    dist1 = jax.random.uniform(k1, (200,), jnp.float32, minval=0.0, maxval=cutoff)
    y1 = mod32(dist1)
    jax.block_until_ready(y1)
    ref1 = _reference(dist1, mod32.offsets, mod32.coeff)
    assert y1.shape == (200, 32), y1.shape
    assert jnp.allclose(y1, ref1, atol=2e-5, rtol=1e-4), \
        float(jnp.max(jnp.abs(y1 - ref1)))

    # Case 2: n_rbf=20 -> fold=32, L=640; dist shaped (2, 50) (n=100, not a multiple of
    # fold) -> exercises the pad + trailing-slice path.
    mod20 = GaussianRBFIPUJax(n_rbf=20, cutoff=cutoff, start=0.0)
    dist2 = jax.random.uniform(k2, (2, 50), jnp.float32, minval=0.0, maxval=cutoff)
    y2 = mod20(dist2)
    jax.block_until_ready(y2)
    ref2 = _reference(dist2, mod20.offsets, mod20.coeff)
    assert y2.shape == (100, 20), y2.shape
    assert jnp.allclose(y2, ref2, atol=2e-5, rtol=1e-4), \
        float(jnp.max(jnp.abs(y2 - ref2)))

    # Case 3: bf16 output plumbing (output-write-bound kernel; halves HBM traffic).
    mod_bf16 = GaussianRBFIPUJax(n_rbf=32, cutoff=cutoff, start=0.0,
                                 out_dtype=jnp.bfloat16)
    y3 = mod_bf16(dist1)
    jax.block_until_ready(y3)
    assert y3.dtype == jnp.bfloat16
    assert jnp.allclose(y3.astype(jnp.float32), ref1, atol=8e-3, rtol=2e-2), \
        float(jnp.max(jnp.abs(y3.astype(jnp.float32) - ref1)))

    print("KERNEL_OK")
</pallas_src>

<mosaic_0001>
module attributes {stable_mosaic.version = 11 : i64} {
  func.func @_gaussian_rbf_kernel(%arg0: i32, %arg1: memref<32x4xf32, #tpu.memory_space<vmem>>, %arg2: memref<4x128xf32, #tpu.memory_space<vmem>>, %arg3: memref<1x128xf32, #tpu.memory_space<vmem>>, %arg4: memref<32x128xf32, #tpu.memory_space<vmem>>) attributes {dimension_semantics = [#tpu.dimension_semantics<parallel>], iteration_bounds = array<i64: 2>, scalar_prefetch = 0 : i64, scratch_operands = 0 : i64, tpu.core_type = #tpu.core_type<tc>, window_params = [{transform_indices = @transform_0, window_bounds = array<i64: 32, 4>}, {pipeline_mode = #tpu.pipeline_mode<synchronous>, transform_indices = @transform_1, window_bounds = array<i64: 4, 128>}, {pipeline_mode = #tpu.pipeline_mode<synchronous>, transform_indices = @transform_2, window_bounds = array<i64: 1, 128>}, {transform_indices = @transform_3, window_bounds = array<i64: 32, 128>}]} {
    %c0 = arith.constant 0 : index
    %c0_0 = arith.constant 0 : index
    %0 = vector.load %arg1[%c0, %c0_0] : memref<32x4xf32, #tpu.memory_space<vmem>>, vector<32x4xf32>
    %c0_1 = arith.constant 0 : index
    %c0_2 = arith.constant 0 : index
    %1 = vector.load %arg2[%c0_1, %c0_2] : memref<4x128xf32, #tpu.memory_space<vmem>>, vector<4x128xf32>
    %cst = arith.constant dense<0.000000e+00> : vector<32x128xf32>
    %2 = tpu.matmul %0, %1, %cst {dimension_numbers = #tpu.dot_dimension_numbers<[1], [0], [0], [1], [0, 0, 1, 1], [], []>, precision = #tpu.contract_precision<fp32>} : vector<32x4xf32>, vector<4x128xf32>, vector<32x128xf32> -> vector<32x128xf32>
    %c0_3 = arith.constant 0 : index
    %c0_4 = arith.constant 0 : index
    %3 = vector.load %arg3[%c0_3, %c0_4] : memref<1x128xf32, #tpu.memory_space<vmem>>, vector<1x128xf32>
    %4 = vector.broadcast %3 : vector<1x128xf32> to vector<32x128xf32>
    %5 = arith.addf %2, %4 : vector<32x128xf32>
    %cst_5 = arith.constant -19.2200012 : f32
    %6 = vector.broadcast %cst_5 : f32 to vector<32x128xf32>
    %7 = arith.mulf %6, %5 : vector<32x128xf32>
    %8 = arith.mulf %7, %5 : vector<32x128xf32>
    %9 = math.exp %8 : vector<32x128xf32>
    %c0_6 = arith.constant 0 : index
    %c0_7 = arith.constant 0 : index
    %10 = vector.load %arg4[%c0_6, %c0_7] : memref<32x128xf32, #tpu.memory_space<vmem>>, vector<32x128xf32>
    tpu.vector_store %arg4[%c0_6, %c0_7], %9 {strides = array<i32>} : memref<32x128xf32, #tpu.memory_space<vmem>>, vector<32x128xf32>,
    return
  }
  func.func @transform_0(%arg0: i32) -> (i32, i32) {
    %c0_i32 = arith.constant 0 : i32
    %c0_i32_0 = arith.constant 0 : i32
    return %arg0, %c0_i32 : i32, i32
  }
  func.func @transform_1(%arg0: i32) -> (i32, i32) {
    %c0_i32 = arith.constant 0 : i32
    %c0_i32_0 = arith.constant 0 : i32
    %c0_i32_1 = arith.constant 0 : i32
    return %c0_i32, %c0_i32_0 : i32, i32
  }
  func.func @transform_2(%arg0: i32) -> (i32, i32) {
    %c0_i32 = arith.constant 0 : i32
    %c0_i32_0 = arith.constant 0 : i32
    %c0_i32_1 = arith.constant 0 : i32
    return %c0_i32, %c0_i32_0 : i32, i32
  }
  func.func @transform_3(%arg0: i32) -> (i32, i32) {
    %c0_i32 = arith.constant 0 : i32
    %c0_i32_0 = arith.constant 0 : i32
    return %arg0, %c0_i32 : i32, i32
  }
}

</mosaic_0001>

<llo_original>
// kernel: tpu_custom_call.1
$region0: #{tpu_custom_call.1}
  #allocation0 [shape = 'u32[]', space=smem, size = 0x4, offset = 0x4, fixed_abs, tag = 'smem constant byte address 0x4 - core index']
  #allocation1 [shape = 'u32[144,128]{1,0:T(1,128)}', space=vmem, size = 0x12000, scoped, tag = 'internal scratch']
  %s0 = inlined_call_operand.vmem [shape: f32[50,4], index: 0, kind: input, shape index: {}]
  %s1 = inlined_call_operand.vmem [shape: f32[4,128], index: 1, kind: input, shape index: {}]
  %s2 = inlined_call_operand.vmem [shape: f32[1,128], index: 2, kind: input, shape index: {}]
  %s3 = inlined_call_operand.hbm [shape: f32[50,128], index: 3, kind: output, shape index: {}]
  %s4 = sld [smem:[#allocation0]]
  $region45: #{tpu_custom_call.1} parent=0
    _
  %s6 = ssub.s32 1, %s4
  %s7 = scalar_select 0, %s6, %s4
  $region1: #{tpu_custom_call.1} parent=0
    #allocation2 [shape = 'u8[32768]{0}', space=vmem, size = 0x8000, scoped, tag = 'output window, operand 0']
    #allocation3 [shape = 's32[2]{0}', space=sflag, size = 0x8, scoped, tag = 'scoped memory for tpu_custom_call.1']
    %8 = vsyncpa [#allocation3], 0
    %s9 = scalar_lea.sflag [#allocation3], 1
    %10 = vsyncpa %s9, 0
    loop: start=0, step=1, limit=4
    $region2: #{tpu_custom_call.1} parent=1 // loop_pre_header
      _
    $region3: #{tpu_custom_call.1} parent=1 // loop_header
      %s12 = sphi 0, %s16
      %p13 = scmp.ge.s32.totalorder %s12, 4
      %s22 = sphi 0, %s24
      %s25 = sphi 0, %s22
      %s26 = sphi 0, %s25
      %s42 = sphi 0, %s26
      %s46 = sphi 0, %s46
      %s48 = sphi 0, %s46
      %s49 = sphi 0, %s48
      %s63 = sphi 0, %s49
      %s67 = sphi 0, %s67
      %s69 = sphi 0, %s67
      %s70 = sphi 0, %s69
      %s84 = sphi 0, %s70
      %s90 = sphi 0, %s92
      %s93 = sphi 0, %s90
      %s94 = sphi 0, %s93
      %s110 = sphi 0, %s94
    $region4: #{tpu_custom_call.1} parent=1 // loop_header_branch
      %15 = sbr.rel (%p13) target = $region8
    $region5: #{tpu_custom_call.1} parent=1 // loop_body
      %s17 = ssub.s32 %s12, 1
      %s18 = ssub.s32 %s12, 2
      %s19 = sadd.s32 %s12, 1
      %s20 = ssub.s32 %s12, %s19
      %p21 = scmp.eq.s32.totalorder %s20, 0
      %s23 = sadd.s32 %s22, 1
      %s24 = scalar_select %p21, %s22, %s23
      %p27 = pneg %p21
      %p28 = scmp.eq.s32.totalorder %s12, 1
      %p29 = por %p27, %p28
      %p30 = scmp.ne.s32.totalorder %s22, %s25
      %p31 = scmp.eq.s32.totalorder %s12, 0
      %p32 = por %p30, %p31
      %p33 = scmp.ne.s32.totalorder %s22, %s25
      %p34 = scmp.eq.s32.totalorder %s17, 1
      %p35 = por %p33, %p34
      %p36 = scmp.ne.s32.totalorder %s25, %s26
      %p37 = scmp.eq.s32.totalorder %s17, 0
      %p38 = por %p36, %p37
      %p39 = scmp.ne.s32.totalorder %s25, %s26
      %p40 = scmp.eq.s32.totalorder %s18, 1
      %p41 = por %p39, %p40
      %p43 = scmp.ne.s32.totalorder %s26, %s42
      %p44 = scmp.eq.s32.totalorder %s18, 0
      %p45 = por %p43, %p44
      %s47 = sadd.s32 %s46, 1
      %p50 = scmp.eq.s32.totalorder %s12, 1
      %p51 = scmp.ne.s32.totalorder %s46, %s48
      %p52 = scmp.eq.s32.totalorder %s12, 0
      %p53 = por %p51, %p52
      %p54 = scmp.ne.s32.totalorder %s46, %s48
      %p55 = scmp.eq.s32.totalorder %s17, 1
      %p56 = por %p54, %p55
      %p57 = scmp.ne.s32.totalorder %s48, %s49
      %p58 = scmp.eq.s32.totalorder %s17, 0
      %p59 = por %p57, %p58
      %p60 = scmp.ne.s32.totalorder %s48, %s49
      %p61 = scmp.eq.s32.totalorder %s18, 1
      %p62 = por %p60, %p61
      %p64 = scmp.ne.s32.totalorder %s49, %s63
      %p65 = scmp.eq.s32.totalorder %s18, 0
      %p66 = por %p64, %p65
      %s68 = sadd.s32 %s67, 1
      %p71 = scmp.eq.s32.totalorder %s12, 1
      %p72 = scmp.ne.s32.totalorder %s67, %s69
      %p73 = scmp.eq.s32.totalorder %s12, 0
      %p74 = por %p72, %p73
      %p75 = scmp.ne.s32.totalorder %s67, %s69
      %p76 = scmp.eq.s32.totalorder %s17, 1
      %p77 = por %p75, %p76
      %p78 = scmp.ne.s32.totalorder %s69, %s70
      %p79 = scmp.eq.s32.totalorder %s17, 0
      %p80 = por %p78, %p79
      %p81 = scmp.ne.s32.totalorder %s69, %s70
      %p82 = scmp.eq.s32.totalorder %s18, 1
      %p83 = por %p81, %p82
      %p85 = scmp.ne.s32.totalorder %s70, %s84
      %p86 = scmp.eq.s32.totalorder %s18, 0
      %p87 = por %p85, %p86
      %s88 = ssub.s32 %s12, %s19
      %p89 = scmp.eq.s32.totalorder %s88, 0
      %s91 = sadd.s32 %s90, 1
      %s92 = scalar_select %p89, %s90, %s91
      %p95 = pneg %p89
      %p96 = scmp.eq.s32.totalorder %s12, 1
      %p97 = por %p95, %p96
      %p98 = scmp.ne.s32.totalorder %s90, %s93
      %p99 = scmp.eq.s32.totalorder %s12, 0
      %p100 = por %p98, %p99
      %p101 = scmp.ne.s32.totalorder %s90, %s93
      %p102 = scmp.eq.s32.totalorder %s17, 1
      %p103 = por %p101, %p102
      %p104 = scmp.ne.s32.totalorder %s93, %s94
      %p105 = scmp.eq.s32.totalorder %s17, 0
      %p106 = por %p104, %p105
      %p107 = scmp.ne.s32.totalorder %s93, %s94
      %p108 = scmp.eq.s32.totalorder %s18, 1
      %p109 = por %p107, %p108
      %p111 = scmp.ne.s32.totalorder %s94, %s110
      %p112 = scmp.eq.s32.totalorder %s18, 0
      %p113 = por %p111, %p112
      %p114 = scmp.le.s32.totalorder 1, %s12
      %p115 = scmp.lt.s32.totalorder %s12, 3
      %p116 = pnand %p114, %p115
      %p117 = pneg %p116
      // Predicated region
      $region9: #{tpu_custom_call.1} parent=5 // pred_check
        _
      $region10: #{tpu_custom_call.1} parent=5 // pred_check_branch
        %119 = sbr.rel (%p116) target = $region12
      $region11: #{tpu_custom_call.1} parent=5 // pred_region
        %s120 = ssub.s32 %s12, 1
        // Predicated region
        $region13: #{tpu_custom_call.1} parent=11 // pred_check
          %p121 = pneg %p59
        $region14: #{tpu_custom_call.1} parent=11 // pred_check_branch
          %123 = sbr.rel (%p121) target = $region16
        $region15: #{tpu_custom_call.1} parent=11 // pred_region
          _
        $region16: #{tpu_custom_call.1} parent=11 // pred_fallthru
          _
        // Predicated region
        $region17: #{tpu_custom_call.1} parent=11 // pred_check
          %p124 = pneg %p80
        $region18: #{tpu_custom_call.1} parent=11 // pred_check_branch
          %126 = sbr.rel (%p124) target = $region20
        $region19: #{tpu_custom_call.1} parent=11 // pred_region
          _
        $region20: #{tpu_custom_call.1} parent=11 // pred_fallthru
          _
      $region12: #{tpu_custom_call.1} parent=5 // pred_fallthru
        _
      %p127 = scmp.lt.s32.totalorder %s12, 2
      // Predicated region
      $region21: #{tpu_custom_call.1} parent=5 // pred_check
        %p128 = pneg %p127
      $region22: #{tpu_custom_call.1} parent=5 // pred_check_branch
        %130 = sbr.rel (%p128) target = $region24
      $region23: #{tpu_custom_call.1} parent=5 // pred_region
        // Predicated region
        $region25: #{tpu_custom_call.1} parent=23 // pred_check
          %p131 = pneg %p32
        $region26: #{tpu_custom_call.1} parent=23 // pred_check_branch
          %133 = sbr.rel (%p131) target = $region28
        $region27: #{tpu_custom_call.1} parent=23 // pred_region
          %s134 = smul.u32 4, %s12
          %s135 = ssub.s32 7, %s134
          %p136 = scmp.lt.s32.totalorder %s135, 4
          %s137 = scalar_select %p136, %s135, 4
          %s138 = smul.u32 128, %s137
          %p139 = scmp.lt.s32.totalorder %s134, 6
          %s140 = scalar_select %p139, %s134, 6
          %s141 = smul.addr %s140, 8
          %s142 = scalar_lea.vmem %s0, %s141
          %s143 = smul.u32 4, %s12
          %s144 = ssub.s32 7, %s143
          %p145 = scmp.lt.s32.totalorder %s144, 4
          %s146 = scalar_select %p145, %s144, 4
          %s147 = smul.u32 128, %s146
        $region28: #{tpu_custom_call.1} parent=23 // pred_fallthru
          _
      $region24: #{tpu_custom_call.1} parent=5 // pred_fallthru
        _
      %p148 = scmp.le.s32.totalorder 1, %s12
      %p149 = scmp.lt.s32.totalorder %s12, 3
      %p150 = pnand %p148, %p149
      %p151 = pneg %p150
      // Predicated region
      $region29: #{tpu_custom_call.1} parent=5 // pred_check
        _
      $region30: #{tpu_custom_call.1} parent=5 // pred_check_branch
        %153 = sbr.rel (%p150) target = $region32
      $region31: #{tpu_custom_call.1} parent=5 // pred_region
        %s154 = ssub.s32 %s12, 1
        %s155 = smul.u32 4, %s17
        %s156 = ssub.s32 7, %s155
        %p157 = scmp.lt.s32.totalorder %s156, 4
        %s158 = scalar_select %p157, %s156, 4
        %s159 = smul.u32 128, %s158
        %p160 = scmp.lt.s32.totalorder %s155, 6
        %s161 = scalar_select %p160, %s155, 6
        %s162 = smul.addr %s161, 8
        %s163 = scalar_lea.vmem %s0, %s162
        %p164 = pneg %p38
        %p165 = pneg %p35
        %p166 = pneg %p59
        %p167 = pneg %p56
        %p168 = pneg %p80
        %p169 = pneg %p77
        %p170 = pneg %p106
        %p171 = pneg %p103
        %s172 = sand.u32 %s93, 1
        %s173 = scalar_lea.sflag [#allocation3], %s172
        %s174 = sand.u32 %s93, 1
        %s175 = smul.addr %s174, 32
        %s176 = scalar_lea.vmem [#allocation2], %s175
        %s177 = smul.u32 4, %s17
        %s178 = ssub.s32 7, %s177
        %p179 = scmp.lt.s32.totalorder %s178, 4
        %s180 = scalar_select %p179, %s178, 4
        %s181 = smul.u32 128, %s180
        %p182 = scmp.lt.s32.totalorder %s177, 6
        %s183 = scalar_select %p182, %s177, 6
        %s184 = smul.addr %s183, 8
        %s185 = scalar_lea.vmem %s0, %s184
        %s186 = smul.u32 4, %s17
        %s187 = ssub.s32 7, %s186
        %p188 = scmp.lt.s32.totalorder %s187, 4
        %s189 = scalar_select %p188, %s187, 4
        %s190 = smul.u32 128, %s189
        %s191 = smul.u32 4, %s17
        %s192 = ssub.s32 7, %s191
        %p193 = scmp.lt.s32.totalorder %s192, 4
        %s194 = scalar_select %p193, %s192, 4
        %s195 = smul.u32 128, %s194
        %v196 = vld [vmem:[%s185] sm:$0xff]
        %v197 = vld [vmem:[%s185 + $0x8] sm:$0xff]
        %v198 = vld [vmem:[%s185 + $0x10] sm:$0xff]
        %v199 = vld [vmem:[%s185 + $0x18] sm:$0xff]
        %v200 = vld [vmem:[%s1] sm:$0xf]
        %v201 = vld [vmem:[%s2] sm:$0x1]
        %v203 = vlaneseq
        %v204 = vshrl.u32 %v203, 7
        %v205 = vsub.s32 0, %v204
        %v206 = vrot.slane %v201, %v205
        %vm208 = vcmask 31744
        %v210 = vsel %vm208, %v196, 0
        %v213 = vsel %vm208, %v197, 0
        %v216 = vsel %vm208, %v198, 0
        %v219 = vsel %vm208, %v199, 0
        %vm221 = vcmask 1043456
        %v223 = vsel %vm221, %v200, 0
        %225 = vmatprep.subr.mxu0 0.0
        %v226 = vand.u32 %v223, 4294901760
        %227 = vmatpush1.msra.mxu0 %v226
        %228 = vmatprep.subr.mxu0 0.0
        %229 = vmatpush1.msra.mxu0 0.0
        %230 = vmatprep.subr.mxu0 0.0
        %231 = vmatpush1.msra.mxu0 0.0
        %232 = vmatprep.subr.mxu0 0.0
        %233 = vmatpush1.msra.mxu0 0.0
        %234 = vmatprep.subr.mxu0 0.0
        %235 = vmatpush1.msra.mxu0 0.0
        %236 = vmatprep.subr.mxu0 0.0
        %237 = vmatpush1.msra.mxu0 0.0
        %238 = vmatprep.subr.mxu0 0.0
        %239 = vmatpush1.msra.mxu0 0.0
        %240 = vmatprep.subr.mxu0 0.0
        %241 = vmatpush1.msra.mxu0 0.0
        %242 = vmatprep.subr.mxu0 0.0
        %243 = vmatpush1.msra.mxu0 0.0
        %244 = vmatprep.subr.mxu0 0.0
        %245 = vmatpush1.msra.mxu0 0.0
        %246 = vmatprep.subr.mxu0 0.0
        %247 = vmatpush1.msra.mxu0 0.0
        %248 = vmatprep.subr.mxu0 0.0
        %249 = vmatpush1.msra.mxu0 0.0
        %250 = vmatprep.subr.mxu0 0.0
        %251 = vmatpush1.msra.mxu0 0.0
        %252 = vmatprep.subr.mxu0 0.0
        %253 = vmatpush1.msra.mxu0 0.0
        %254 = vmatprep.subr.mxu0 0.0
        %255 = vmatpush1.msra.mxu0 0.0
        %256 = vmatprep.subr.mxu0 0.0
        %257 = vmatpush1.msra.mxu0 0.0
        %258 = vmatprep.subr.mxu0 0.0
        %259 = vmatpush1.msra.mxu0 0.0
        %260 = vmatprep.subr.mxu0 0.0
        %261 = vmatpush1.msra.mxu0 0.0
        %262 = vmatprep.subr.mxu0 0.0
        %263 = vmatpush1.msra.mxu0 0.0
        %264 = vmatprep.subr.mxu0 0.0
        %265 = vmatpush1.msra.mxu0 0.0
        %266 = vmatprep.subr.mxu0 0.0
        %267 = vmatpush1.msra.mxu0 0.0
        %268 = vmatprep.subr.mxu0 0.0
        %269 = vmatpush1.msra.mxu0 0.0
        %270 = vmatprep.subr.mxu0 0.0
        %271 = vmatpush1.msra.mxu0 0.0
        %272 = vmatprep.subr.mxu0 0.0
        %273 = vmatpush1.msra.mxu0 0.0
        %274 = vmatprep.subr.mxu0 0.0
        %275 = vmatpush1.msra.mxu0 0.0
        %276 = vmatprep.subr.mxu0 0.0
        %277 = vmatpush1.msra.mxu0 0.0
        %278 = vmatprep.subr.mxu0 0.0
        %279 = vmatpush1.msra.mxu0 0.0
        %280 = vmatprep.subr.mxu0 0.0
        %281 = vmatpush1.msra.mxu0 0.0
        %282 = vmatprep.subr.mxu0 0.0
        %283 = vmatpush1.msra.mxu0 0.0
        %284 = vmatprep.subr.mxu0 0.0
        %285 = vmatpush1.msra.mxu0 0.0
        %286 = vmatprep.subr.mxu0 0.0
        %287 = vmatpush1.msra.mxu0 0.0
        %288 = vmatprep.subr.mxu0 0.0
        %289 = vmatpush1.msra.mxu0 0.0
        %290 = vmatprep.mubr.f32.mxu0 0.0
        %v291 = vand.u32 %v210, 4294901760
        %v292 = vsub.f32 %v210, %v291
        %v293 = vand.u32 %v292, 4294901760
        %v294 = vsub.f32 %v292, %v293
        %v295 = vand.u32 %v294, 4294901760
        %296 = vmatmul.mubr.f32.gmra.mrb[0].mxu0 %v295
        %v297 = vpop.f32.mrb[0].mxu0
        %v298 = vadd.f32 %v206, %v297
        %v299 = vpop.f32.mrb[0].mxu0
        %300 = vmatprep.mubr.f32.mxu0 0.0
        %v301 = vand.u32 %v213, 4294901760
        %v302 = vsub.f32 %v213, %v301
        %v303 = vand.u32 %v302, 4294901760
        %v304 = vsub.f32 %v302, %v303
        %v305 = vand.u32 %v304, 4294901760
        %306 = vmatmul.mubr.f32.gmra.mrb[0].mxu0 %v305
        %v307 = vpop.f32.mrb[0].mxu0
        %v308 = vadd.f32 %v206, %v307
        %v309 = vpop.f32.mrb[0].mxu0
        %310 = vmatprep.mubr.f32.mxu0 0.0
        %v311 = vand.u32 %v216, 4294901760
        %v312 = vsub.f32 %v216, %v311
        %v313 = vand.u32 %v312, 4294901760
        %v314 = vsub.f32 %v312, %v313
        %v315 = vand.u32 %v314, 4294901760
        %316 = vmatmul.mubr.f32.gmra.mrb[0].mxu0 %v315
        %v317 = vpop.f32.mrb[0].mxu0
        %v318 = vadd.f32 %v206, %v317
        %v319 = vpop.f32.mrb[0].mxu0
        %320 = vmatprep.mubr.f32.mxu0 0.0
        %v321 = vand.u32 %v219, 4294901760
        %v322 = vsub.f32 %v219, %v321
        %v323 = vand.u32 %v322, 4294901760
        %v324 = vsub.f32 %v322, %v323
        %v325 = vand.u32 %v324, 4294901760
        %326 = vmatmul.mubr.f32.gmra.mrb[0].mxu0 %v325
        %v327 = vpop.f32.mrb[0].mxu0
        %v328 = vadd.f32 %v206, %v327
        %v329 = vpop.f32.mrb[0].mxu0
        %330 = vdwg.mxu0
        %331 = vmatprep.subr.mxu0 0.0
        %v332 = vand.u32 %v223, 4294901760
        %v333 = vsub.f32 %v223, %v332
        %v334 = vand.u32 %v333, 4294901760
        %v335 = vsub.f32 %v333, %v334
        %v336 = vand.u32 %v335, 4294901760
        %337 = vmatpush1.msra.mxu0 %v336
        %338 = vmatprep.subr.mxu0 0.0
        %339 = vmatpush1.msra.mxu0 0.0
        %340 = vmatprep.subr.mxu0 0.0
        %341 = vmatpush1.msra.mxu0 0.0
        %342 = vmatprep.subr.mxu0 0.0
        %343 = vmatpush1.msra.mxu0 0.0
        %344 = vmatprep.subr.mxu0 0.0
        %345 = vmatpush1.msra.mxu0 0.0
        %346 = vmatprep.subr.mxu0 0.0
        %347 = vmatpush1.msra.mxu0 0.0
        %348 = vmatprep.subr.mxu0 0.0
        %349 = vmatpush1.msra.mxu0 0.0
        %350 = vmatprep.subr.mxu0 0.0
        %351 = vmatpush1.msra.mxu0 0.0
        %352 = vmatprep.subr.mxu0 0.0
        %353 = vmatpush1.msra.mxu0 0.0
        %354 = vmatprep.subr.mxu0 0.0
        %355 = vmatpush1.msra.mxu0 0.0
        %356 = vmatprep.subr.mxu0 0.0
        %357 = vmatpush1.msra.mxu0 0.0
        %358 = vmatprep.subr.mxu0 0.0
        %359 = vmatpush1.msra.mxu0 0.0
        %360 = vmatprep.subr.mxu0 0.0
        %361 = vmatpush1.msra.mxu0 0.0
        %362 = vmatprep.subr.mxu0 0.0
        %363 = vmatpush1.msra.mxu0 0.0
        %364 = vmatprep.subr.mxu0 0.0
        %365 = vmatpush1.msra.mxu0 0.0
        %366 = vmatprep.subr.mxu0 0.0
        %367 = vmatpush1.msra.mxu0 0.0
        %368 = vmatprep.subr.mxu0 0.0
        %369 = vmatpush1.msra.mxu0 0.0
        %370 = vmatprep.subr.mxu0 0.0
        %371 = vmatpush1.msra.mxu0 0.0
        %372 = vmatprep.subr.mxu0 0.0
        %373 = vmatpush1.msra.mxu0 0.0
        %374 = vmatprep.subr.mxu0 0.0
        %375 = vmatpush1.msra.mxu0 0.0
        %376 = vmatprep.subr.mxu0 0.0
        %377 = vmatpush1.msra.mxu0 0.0
        %378 = vmatprep.subr.mxu0 0.0
        %379 = vmatpush1.msra.mxu0 0.0
        %380 = vmatprep.subr.mxu0 0.0
        %381 = vmatpush1.msra.mxu0 0.0
        %382 = vmatprep.subr.mxu0 0.0
        %383 = vmatpush1.msra.mxu0 0.0
        %384 = vmatprep.subr.mxu0 0.0
        %385 = vmatpush1.msra.mxu0 0.0
        %386 = vmatprep.subr.mxu0 0.0
        %387 = vmatpush1.msra.mxu0 0.0
        %388 = vmatprep.subr.mxu0 0.0
        %389 = vmatpush1.msra.mxu0 0.0
        %390 = vmatprep.subr.mxu0 0.0
        %391 = vmatpush1.msra.mxu0 0.0
        %392 = vmatprep.subr.mxu0 0.0
        %393 = vmatpush1.msra.mxu0 0.0
        %394 = vmatprep.subr.mxu0 0.0
        %395 = vmatpush1.msra.mxu0 0.0
        %396 = vmatprep.subr.mxu0 0.0
        %397 = vmatpush1.msra.mxu0 0.0
        %398 = vmatprep.subr.mxu0 0.0
        %399 = vmatpush1.msra.mxu0 0.0
        %400 = vmatprep.mubr.f32.mxu0 0.0
        %v401 = vand.u32 %v210, 4294901760
        %402 = vmatmul.mubr.f32.gmra.mrb[0].mxu0 %v401
        %v403 = vpop.f32.mrb[0].mxu0
        %v404 = vadd.f32 %v298, %v403
        %v405 = vpop.f32.mrb[0].mxu0
        %406 = vmatprep.mubr.f32.mxu0 0.0
        %v407 = vand.u32 %v213, 4294901760
        %408 = vmatmul.mubr.f32.gmra.mrb[0].mxu0 %v407
        %v409 = vpop.f32.mrb[0].mxu0
        %v410 = vadd.f32 %v308, %v409
        %v411 = vpop.f32.mrb[0].mxu0
        %412 = vmatprep.mubr.f32.mxu0 0.0
        %v413 = vand.u32 %v216, 4294901760
        %414 = vmatmul.mubr.f32.gmra.mrb[0].mxu0 %v413
        %v415 = vpop.f32.mrb[0].mxu0
        %v416 = vadd.f32 %v318, %v415
        %v417 = vpop.f32.mrb[0].mxu0
        %418 = vmatprep.mubr.f32.mxu0 0.0
        %v419 = vand.u32 %v219, 4294901760
        %420 = vmatmul.mubr.f32.gmra.mrb[0].mxu0 %v419
        %v421 = vpop.f32.mrb[0].mxu0
        %v422 = vadd.f32 %v328, %v421
        %v423 = vpop.f32.mrb[0].mxu0
        %424 = vdwg.mxu0
        %425 = vmatprep.subr.mxu0 0.0
        %v426 = vand.u32 %v223, 4294901760
        %v427 = vsub.f32 %v223, %v426
        %428 = vmatpush1.msra.mxu0 %v427
        %429 = vmatprep.subr.mxu0 0.0
        %430 = vmatpush1.msra.mxu0 0.0
        %431 = vmatprep.subr.mxu0 0.0
        %432 = vmatpush1.msra.mxu0 0.0
        %433 = vmatprep.subr.mxu0 0.0
        %434 = vmatpush1.msra.mxu0 0.0
        %435 = vmatprep.subr.mxu0 0.0
        %436 = vmatpush1.msra.mxu0 0.0
        %437 = vmatprep.subr.mxu0 0.0
        %438 = vmatpush1.msra.mxu0 0.0
        %439 = vmatprep.subr.mxu0 0.0
        %440 = vmatpush1.msra.mxu0 0.0
        %441 = vmatprep.subr.mxu0 0.0
        %442 = vmatpush1.msra.mxu0 0.0
        %443 = vmatprep.subr.mxu0 0.0
        %444 = vmatpush1.msra.mxu0 0.0
        %445 = vmatprep.subr.mxu0 0.0
        %446 = vmatpush1.msra.mxu0 0.0
        %447 = vmatprep.subr.mxu0 0.0
        %448 = vmatpush1.msra.mxu0 0.0
        %449 = vmatprep.subr.mxu0 0.0
        %450 = vmatpush1.msra.mxu0 0.0
        %451 = vmatprep.subr.mxu0 0.0
        %452 = vmatpush1.msra.mxu0 0.0
        %453 = vmatprep.subr.mxu0 0.0
        %454 = vmatpush1.msra.mxu0 0.0
        %455 = vmatprep.subr.mxu0 0.0
        %456 = vmatpush1.msra.mxu0 0.0
        %457 = vmatprep.subr.mxu0 0.0
        %458 = vmatpush1.msra.mxu0 0.0
        %459 = vmatprep.subr.mxu0 0.0
        %460 = vmatpush1.msra.mxu0 0.0
        %461 = vmatprep.subr.mxu0 0.0
        %462 = vmatpush1.msra.mxu0 0.0
        %463 = vmatprep.subr.mxu0 0.0
        %464 = vmatpush1.msra.mxu0 0.0
        %465 = vmatprep.subr.mxu0 0.0
        %466 = vmatpush1.msra.mxu0 0.0
        %467 = vmatprep.subr.mxu0 0.0
        %468 = vmatpush1.msra.mxu0 0.0
        %469 = vmatprep.subr.mxu0 0.0
        %470 = vmatpush1.msra.mxu0 0.0
        %471 = vmatprep.subr.mxu0 0.0
        %472 = vmatpush1.msra.mxu0 0.0
        %473 = vmatprep.subr.mxu0 0.0
        %474 = vmatpush1.msra.mxu0 0.0
        %475 = vmatprep.subr.mxu0 0.0
        %476 = vmatpush1.msra.mxu0 0.0
        %477 = vmatprep.subr.mxu0 0.0
        %478 = vmatpush1.msra.mxu0 0.0
        %479 = vmatprep.subr.mxu0 0.0
        %480 = vmatpush1.msra.mxu0 0.0
        %481 = vmatprep.subr.mxu0 0.0
        %482 = vmatpush1.msra.mxu0 0.0
        %483 = vmatprep.subr.mxu0 0.0
        %484 = vmatpush1.msra.mxu0 0.0
        %485 = vmatprep.subr.mxu0 0.0
        %486 = vmatpush1.msra.mxu0 0.0
        %487 = vmatprep.subr.mxu0 0.0
        %488 = vmatpush1.msra.mxu0 0.0
        %489 = vmatprep.subr.mxu0 0.0
        %490 = vmatpush1.msra.mxu0 0.0
        %491 = vmatprep.mubr.f32.mxu0 0.0
        %v492 = vand.u32 %v210, 4294901760
        %v493 = vsub.f32 %v210, %v492
        %494 = vmatmul.mubr.f32.gmra.mrb[0].mxu0 %v493
        %v495 = vpop.f32.mrb[0].mxu0
        %v496 = vadd.f32 %v404, %v495
        %v497 = vpop.f32.mrb[0].mxu0
        %498 = vmatprep.mubr.f32.mxu0 0.0
        %v499 = vand.u32 %v213, 4294901760
        %v500 = vsub.f32 %v213, %v499
        %501 = vmatmul.mubr.f32.gmra.mrb[0].mxu0 %v500
        %v502 = vpop.f32.mrb[0].mxu0
        %v503 = vadd.f32 %v410, %v502
        %v504 = vpop.f32.mrb[0].mxu0
        %505 = vmatprep.mubr.f32.mxu0 0.0
        %v506 = vand.u32 %v216, 4294901760
        %v507 = vsub.f32 %v216, %v506
        %508 = vmatmul.mubr.f32.gmra.mrb[0].mxu0 %v507
        %v509 = vpop.f32.mrb[0].mxu0
        %v510 = vadd.f32 %v416, %v509
        %v511 = vpop.f32.mrb[0].mxu0
        %512 = vmatprep.mubr.f32.mxu0 0.0
        %v513 = vand.u32 %v219, 4294901760
        %v514 = vsub.f32 %v219, %v513
        %515 = vmatmul.mubr.f32.gmra.mrb[0].mxu0 %v514
        %v516 = vpop.f32.mrb[0].mxu0
        %v517 = vadd.f32 %v422, %v516
        %v518 = vpop.f32.mrb[0].mxu0
        %519 = vdwg.mxu0
        %520 = vmatprep.subr.mxu0 0.0
        %v521 = vand.u32 %v223, 4294901760
        %522 = vmatpush1.msra.mxu0 %v521
        %523 = vmatprep.subr.mxu0 0.0
        %524 = vmatpush1.msra.mxu0 0.0
        %525 = vmatprep.subr.mxu0 0.0
        %526 = vmatpush1.msra.mxu0 0.0
        %527 = vmatprep.subr.mxu0 0.0
        %528 = vmatpush1.msra.mxu0 0.0
        %529 = vmatprep.subr.mxu0 0.0
        %530 = vmatpush1.msra.mxu0 0.0
        %531 = vmatprep.subr.mxu0 0.0
        %532 = vmatpush1.msra.mxu0 0.0
        %533 = vmatprep.subr.mxu0 0.0
        %534 = vmatpush1.msra.mxu0 0.0
        %535 = vmatprep.subr.mxu0 0.0
        %536 = vmatpush1.msra.mxu0 0.0
        %537 = vmatprep.subr.mxu0 0.0
        %538 = vmatpush1.msra.mxu0 0.0
        %539 = vmatprep.subr.mxu0 0.0
        %540 = vmatpush1.msra.mxu0 0.0
        %541 = vmatprep.subr.mxu0 0.0
        %542 = vmatpush1.msra.mxu0 0.0
        %543 = vmatprep.subr.mxu0 0.0
        %544 = vmatpush1.msra.mxu0 0.0
        %545 = vmatprep.subr.mxu0 0.0
        %546 = vmatpush1.msra.mxu0 0.0
        %547 = vmatprep.subr.mxu0 0.0
        %548 = vmatpush1.msra.mxu0 0.0
        %549 = vmatprep.subr.mxu0 0.0
        %550 = vmatpush1.msra.mxu0 0.0
        %551 = vmatprep.subr.mxu0 0.0
        %552 = vmatpush1.msra.mxu0 0.0
        %553 = vmatprep.subr.mxu0 0.0
        %554 = vmatpush1.msra.mxu0 0.0
        %555 = vmatprep.subr.mxu0 0.0
        %556 = vmatpush1.msra.mxu0 0.0
        %557 = vmatprep.subr.mxu0 0.0
        %558 = vmatpush1.msra.mxu0 0.0
        %559 = vmatprep.subr.mxu0 0.0
        %560 = vmatpush1.msra.mxu0 0.0
        %561 = vmatprep.subr.mxu0 0.0
        %562 = vmatpush1.msra.mxu0 0.0
        %563 = vmatprep.subr.mxu0 0.0
        %564 = vmatpush1.msra.mxu0 0.0
        %565 = vmatprep.subr.mxu0 0.0
        %566 = vmatpush1.msra.mxu0 0.0
        %567 = vmatprep.subr.mxu0 0.0
        %568 = vmatpush1.msra.mxu0 0.0
        %569 = vmatprep.subr.mxu0 0.0
        %570 = vmatpush1.msra.mxu0 0.0
        %571 = vmatprep.subr.mxu0 0.0
        %572 = vmatpush1.msra.mxu0 0.0
        %573 = vmatprep.subr.mxu0 0.0
        %574 = vmatpush1.msra.mxu0 0.0
        %575 = vmatprep.subr.mxu0 0.0
        %576 = vmatpush1.msra.mxu0 0.0
        %577 = vmatprep.subr.mxu0 0.0
        %578 = vmatpush1.msra.mxu0 0.0
        %579 = vmatprep.subr.mxu0 0.0
        %580 = vmatpush1.msra.mxu0 0.0
        %581 = vmatprep.subr.mxu0 0.0
        %582 = vmatpush1.msra.mxu0 0.0
        %583 = vmatprep.subr.mxu0 0.0
        %584 = vmatpush1.msra.mxu0 0.0
        %585 = vmatprep.mubr.f32.mxu0 0.0
        %v586 = vand.u32 %v210, 4294901760
        %v587 = vsub.f32 %v210, %v586
        %v588 = vand.u32 %v587, 4294901760
        %589 = vmatmul.mubr.f32.gmra.mrb[0].mxu0 %v588
        %v590 = vpop.f32.mrb[0].mxu0
        %v591 = vadd.f32 %v496, %v590
        %v592 = vpop.f32.mrb[0].mxu0
        %593 = vmatprep.mubr.f32.mxu0 0.0
        %v594 = vand.u32 %v213, 4294901760
        %v595 = vsub.f32 %v213, %v594
        %v596 = vand.u32 %v595, 4294901760
        %597 = vmatmul.mubr.f32.gmra.mrb[0].mxu0 %v596
        %v598 = vpop.f32.mrb[0].mxu0
        %v599 = vadd.f32 %v503, %v598
        %v600 = vpop.f32.mrb[0].mxu0
        %601 = vmatprep.mubr.f32.mxu0 0.0
        %v602 = vand.u32 %v216, 4294901760
        %v603 = vsub.f32 %v216, %v602
        %v604 = vand.u32 %v603, 4294901760
        %605 = vmatmul.mubr.f32.gmra.mrb[0].mxu0 %v604
        %v606 = vpop.f32.mrb[0].mxu0
        %v607 = vadd.f32 %v510, %v606
        %v608 = vpop.f32.mrb[0].mxu0
        %609 = vmatprep.mubr.f32.mxu0 0.0
        %v610 = vand.u32 %v219, 4294901760
        %v611 = vsub.f32 %v219, %v610
        %v612 = vand.u32 %v611, 4294901760
        %613 = vmatmul.mubr.f32.gmra.mrb[0].mxu0 %v612
        %v614 = vpop.f32.mrb[0].mxu0
        %v615 = vadd.f32 %v517, %v614
        %v616 = vpop.f32.mrb[0].mxu0
        %617 = vdwg.mxu0
        %618 = vmatprep.subr.mxu0 0.0
        %v619 = vand.u32 %v223, 4294901760
        %v620 = vsub.f32 %v223, %v619
        %v621 = vand.u32 %v620, 4294901760
        %622 = vmatpush1.msra.mxu0 %v621
        %623 = vmatprep.subr.mxu0 0.0
        %624 = vmatpush1.msra.mxu0 0.0
        %625 = vmatprep.subr.mxu0 0.0
        %626 = vmatpush1.msra.mxu0 0.0
        %627 = vmatprep.subr.mxu0 0.0
        %628 = vmatpush1.msra.mxu0 0.0
        %629 = vmatprep.subr.mxu0 0.0
        %630 = vmatpush1.msra.mxu0 0.0
        %631 = vmatprep.subr.mxu0 0.0
        %632 = vmatpush1.msra.mxu0 0.0
        %633 = vmatprep.subr.mxu0 0.0
        %634 = vmatpush1.msra.mxu0 0.0
        %635 = vmatprep.subr.mxu0 0.0
        %636 = vmatpush1.msra.mxu0 0.0
        %637 = vmatprep.subr.mxu0 0.0
        %638 = vmatpush1.msra.mxu0 0.0
        %639 = vmatprep.subr.mxu0 0.0
        %640 = vmatpush1.msra.mxu0 0.0
        %641 = vmatprep.subr.mxu0 0.0
        %642 = vmatpush1.msra.mxu0 0.0
        %643 = vmatprep.subr.mxu0 0.0
        %644 = vmatpush1.msra.mxu0 0.0
        %645 = vmatprep.subr.mxu0 0.0
        %646 = vmatpush1.msra.mxu0 0.0
        %647 = vmatprep.subr.mxu0 0.0
        %648 = vmatpush1.msra.mxu0 0.0
        %649 = vmatprep.subr.mxu0 0.0
        %650 = vmatpush1.msra.mxu0 0.0
        %651 = vmatprep.subr.mxu0 0.0
        %652 = vmatpush1.msra.mxu0 0.0
        %653 = vmatprep.subr.mxu0 0.0
        %654 = vmatpush1.msra.mxu0 0.0
        %655 = vmatprep.subr.mxu0 0.0
        %656 = vmatpush1.msra.mxu0 0.0
        %657 = vmatprep.subr.mxu0 0.0
        %658 = vmatpush1.msra.mxu0 0.0
        %659 = vmatprep.subr.mxu0 0.0
        %660 = vmatpush1.msra.mxu0 0.0
        %661 = vmatprep.subr.mxu0 0.0
        %662 = vmatpush1.msra.mxu0 0.0
        %663 = vmatprep.subr.mxu0 0.0
        %664 = vmatpush1.msra.mxu0 0.0
        %665 = vmatprep.subr.mxu0 0.0
        %666 = vmatpush1.msra.mxu0 0.0
        %667 = vmatprep.subr.mxu0 0.0
        %668 = vmatpush1.msra.mxu0 0.0
        %669 = vmatprep.subr.mxu0 0.0
        %670 = vmatpush1.msra.mxu0 0.0
        %671 = vmatprep.subr.mxu0 0.0
        %672 = vmatpush1.msra.mxu0 0.0
        %673 = vmatprep.subr.mxu0 0.0
        %674 = vmatpush1.msra.mxu0 0.0
        %675 = vmatprep.subr.mxu0 0.0
        %676 = vmatpush1.msra.mxu0 0.0
        %677 = vmatprep.subr.mxu0 0.0
        %678 = vmatpush1.msra.mxu0 0.0
        %679 = vmatprep.subr.mxu0 0.0
        %680 = vmatpush1.msra.mxu0 0.0
        %681 = vmatprep.subr.mxu0 0.0
        %682 = vmatpush1.msra.mxu0 0.0
        %683 = vmatprep.subr.mxu0 0.0
        %684 = vmatpush1.msra.mxu0 0.0
        %685 = vmatprep.mubr.f32.mxu0 0.0
        %v686 = vand.u32 %v210, 4294901760
        %687 = vmatmul.mubr.f32.gmra.mrb[0].mxu0 %v686
        %v688 = vpop.f32.mrb[0].mxu0
        %v689 = vadd.f32 %v591, %v688
        %v690 = vpop.f32.mrb[0].mxu0
        %691 = vmatprep.mubr.f32.mxu0 0.0
        %v692 = vand.u32 %v213, 4294901760
        %693 = vmatmul.mubr.f32.gmra.mrb[0].mxu0 %v692
        %v694 = vpop.f32.mrb[0].mxu0
        %v695 = vadd.f32 %v599, %v694
        %v696 = vpop.f32.mrb[0].mxu0
        %697 = vmatprep.mubr.f32.mxu0 0.0
        %v698 = vand.u32 %v216, 4294901760
        %699 = vmatmul.mubr.f32.gmra.mrb[0].mxu0 %v698
        %v700 = vpop.f32.mrb[0].mxu0
        %v701 = vadd.f32 %v607, %v700
        %v702 = vpop.f32.mrb[0].mxu0
        %703 = vmatprep.mubr.f32.mxu0 0.0
        %v704 = vand.u32 %v219, 4294901760
        %705 = vmatmul.mubr.f32.gmra.mrb[0].mxu0 %v704
        %v706 = vpop.f32.mrb[0].mxu0
        %v707 = vadd.f32 %v615, %v706
        %v708 = vpop.f32.mrb[0].mxu0
        %709 = vdwg.mxu0
        %710 = vmatprep.subr.mxu0 0.0
        %v711 = vand.u32 %v223, 4294901760
        %712 = vmatpush1.msra.mxu0 %v711
        %713 = vmatprep.subr.mxu0 0.0
        %714 = vmatpush1.msra.mxu0 0.0
        %715 = vmatprep.subr.mxu0 0.0
        %716 = vmatpush1.msra.mxu0 0.0
        %717 = vmatprep.subr.mxu0 0.0
        %718 = vmatpush1.msra.mxu0 0.0
        %719 = vmatprep.subr.mxu0 0.0
        %720 = vmatpush1.msra.mxu0 0.0
        %721 = vmatprep.subr.mxu0 0.0
        %722 = vmatpush1.msra.mxu0 0.0
        %723 = vmatprep.subr.mxu0 0.0
        %724 = vmatpush1.msra.mxu0 0.0
        %725 = vmatprep.subr.mxu0 0.0
        %726 = vmatpush1.msra.mxu0 0.0
        %727 = vmatprep.subr.mxu0 0.0
        %728 = vmatpush1.msra.mxu0 0.0
        %729 = vmatprep.subr.mxu0 0.0
        %730 = vmatpush1.msra.mxu0 0.0
        %731 = vmatprep.subr.mxu0 0.0
        %732 = vmatpush1.msra.mxu0 0.0
        %733 = vmatprep.subr.mxu0 0.0
        %734 = vmatpush1.msra.mxu0 0.0
        %735 = vmatprep.subr.mxu0 0.0
        %736 = vmatpush1.msra.mxu0 0.0
        %737 = vmatprep.subr.mxu0 0.0
        %738 = vmatpush1.msra.mxu0 0.0
        %739 = vmatprep.subr.mxu0 0.0
        %740 = vmatpush1.msra.mxu0 0.0
        %741 = vmatprep.subr.mxu0 0.0
        %742 = vmatpush1.msra.mxu0 0.0
        %743 = vmatprep.subr.mxu0 0.0
        %744 = vmatpush1.msra.mxu0 0.0
        %745 = vmatprep.subr.mxu0 0.0
        %746 = vmatpush1.msra.mxu0 0.0
        %747 = vmatprep.subr.mxu0 0.0
        %748 = vmatpush1.msra.mxu0 0.0
        %749 = vmatprep.subr.mxu0 0.0
        %750 = vmatpush1.msra.mxu0 0.0
        %751 = vmatprep.subr.mxu0 0.0
        %752 = vmatpush1.msra.mxu0 0.0
        %753 = vmatprep.subr.mxu0 0.0
        %754 = vmatpush1.msra.mxu0 0.0
        %755 = vmatprep.subr.mxu0 0.0
        %756 = vmatpush1.msra.mxu0 0.0
        %757 = vmatprep.subr.mxu0 0.0
        %758 = vmatpush1.msra.mxu0 0.0
        %759 = vmatprep.subr.mxu0 0.0
        %760 = vmatpush1.msra.mxu0 0.0
        %761 = vmatprep.subr.mxu0 0.0
        %762 = vmatpush1.msra.mxu0 0.0
        %763 = vmatprep.subr.mxu0 0.0
        %764 = vmatpush1.msra.mxu0 0.0
        %765 = vmatprep.subr.mxu0 0.0
        %766 = vmatpush1.msra.mxu0 0.0
        %767 = vmatprep.subr.mxu0 0.0
        %768 = vmatpush1.msra.mxu0 0.0
        %769 = vmatprep.subr.mxu0 0.0
        %770 = vmatpush1.msra.mxu0 0.0
        %771 = vmatprep.subr.mxu0 0.0
        %772 = vmatpush1.msra.mxu0 0.0
        %773 = vmatprep.subr.mxu0 0.0
        %774 = vmatpush1.msra.mxu0 0.0
        %775 = vmatprep.mubr.f32.mxu0 0.0
        %v776 = vand.u32 %v210, 4294901760
        %777 = vmatmul.mubr.f32.gmra.mrb[0].mxu0 %v776
        %v778 = vpop.f32.mrb[0].mxu0
        %v779 = vadd.f32 %v689, %v778
        %v780 = vpop.f32.mrb[0].mxu0
        %781 = vmatprep.mubr.f32.mxu0 0.0
        %v782 = vand.u32 %v213, 4294901760
        %783 = vmatmul.mubr.f32.gmra.mrb[0].mxu0 %v782
        %v784 = vpop.f32.mrb[0].mxu0
        %v785 = vadd.f32 %v695, %v784
        %v786 = vpop.f32.mrb[0].mxu0
        %787 = vmatprep.mubr.f32.mxu0 0.0
        %v788 = vand.u32 %v216, 4294901760
        %789 = vmatmul.mubr.f32.gmra.mrb[0].mxu0 %v788
        %v790 = vpop.f32.mrb[0].mxu0
        %v791 = vadd.f32 %v701, %v790
        %v792 = vpop.f32.mrb[0].mxu0
        %793 = vmatprep.mubr.f32.mxu0 0.0
        %v794 = vand.u32 %v219, 4294901760
        %795 = vmatmul.mubr.f32.gmra.mrb[0].mxu0 %v794
        %v796 = vpop.f32.mrb[0].mxu0
        %v797 = vadd.f32 %v707, %v796
        %v798 = vpop.f32.mrb[0].mxu0
        %799 = vdwg.mxu0
        %v800 = vmul.f32 %v779, -19.220001
        %v801 = vmul.f32 %v785, -19.220001
        %v802 = vmul.f32 %v791, -19.220001
        %v803 = vmul.f32 %v797, -19.220001
        %v804 = vmul.f32 %v800, %v779
        %v805 = vmul.f32 %v801, %v785
        %v806 = vmul.f32 %v802, %v791
        %v807 = vmul.f32 %v803, %v797
        %v808 = vmul.f32 %v804, 1.442695
        %v809 = vpow.pop %v808
        %v810 = vmul.f32 %v805, 1.442695
        %v811 = vpow.pop %v810
        %v812 = vmul.f32 %v806, 1.442695
        %v813 = vpow.pop %v812
        %v814 = vmul.f32 %v807, 1.442695
        %v815 = vpow.pop %v814
        %816 = vst [vmem:[%s176] sm:$0xff] %v809
        %817 = vst [vmem:[%s176 + $0x8] sm:$0xff] %v811
        %818 = vst [vmem:[%s176 + $0x10] sm:$0xff] %v813
        %819 = vst [vmem:[%s176 + $0x18] sm:$0xff] %v815
        %s820 = sand.u32 %s93, 1
        %s821 = scalar_lea.sflag [#allocation3], %s820
        %s822 = sand.u32 %s93, 1
        %s823 = smul.addr %s822, 32
        %s824 = scalar_lea.vmem [#allocation2], %s823
        // Predicated region
        $region33: #{tpu_custom_call.1} parent=31 // pred_check
          %p825 = pneg %p103
        $region34: #{tpu_custom_call.1} parent=31 // pred_check_branch
          %827 = sbr.rel (%p825) target = $region36
        $region35: #{tpu_custom_call.1} parent=31 // pred_region
          %s828 = smul.u32 4, %s17
          %s829 = ssub.s32 7, %s828
          %p830 = scmp.lt.s32.totalorder %s829, 4
          %s831 = scalar_select %p830, %s829, 4
          %s832 = smul.u32 128, %s831
          %s834 = ssub.s32 512, %s832
          %835 = vsyncadd %s821, %s834
          %p836 = scmp.ne.s32.totalorder 0, %s832
          %s837 = smul.addr %s828, 128
          %s838 = scalar_lea.hbm %s3, %s837
          %s839 = smul.u32 8, %s831
          %s840 = sshll.u32 %s824, 4
          %s841 = int_to_ptr.vmem [resolvable:$true] %s840
          %s842 = sshll.u32 %s839, 4
          %846 = dma.vmem_to_hbm [thread:$0]  (%p836), %s841, %s842, %s838, %s821, 128, 128, 8
        $region36: #{tpu_custom_call.1} parent=31 // pred_fallthru
          _
      $region32: #{tpu_custom_call.1} parent=5 // pred_fallthru
        _
      %p847 = scmp.le.s32.totalorder 2, %s12
      // Predicated region
      $region37: #{tpu_custom_call.1} parent=5 // pred_check
        %p848 = pneg %p847
      $region38: #{tpu_custom_call.1} parent=5 // pred_check_branch
        %850 = sbr.rel (%p848) target = $region40
      $region39: #{tpu_custom_call.1} parent=5 // pred_region
        %s851 = ssub.s32 %s12, 2
        // Predicated region
        $region41: #{tpu_custom_call.1} parent=39 // pred_check
          %p852 = pneg %p109
        $region42: #{tpu_custom_call.1} parent=39 // pred_check_branch
          %854 = sbr.rel (%p852) target = $region44
        $region43: #{tpu_custom_call.1} parent=39 // pred_region
          %s855 = sand.u32 %s94, 1
          %s856 = scalar_lea.sflag [#allocation3], %s855
          %s857 = sand.u32 %s94, 1
          %s858 = smul.addr %s857, 32
          %s859 = scalar_lea.vmem [#allocation2], %s858
          %860 = dma.done %s856, 512
        $region44: #{tpu_custom_call.1} parent=39 // pred_fallthru
          _
      $region40: #{tpu_custom_call.1} parent=5 // pred_fallthru
        _
    $region6: #{tpu_custom_call.1} parent=1 // loop_footer
      %s16 = sadd.s32 1, %s12
    $region7: #{tpu_custom_call.1} parent=1 // loop_footer_branch
      %11 = sbr.rel target = $region3
    $region8: #{tpu_custom_call.1} parent=1 // loop_exit
      _
    %861 = vsyncpa [#allocation3], 1
    %s862 = scalar_lea.sflag [#allocation3], 1
    %863 = vsyncpa %s862, 1

</llo_original>
